<compile_context>
chip_gen: v7x
topology: tpu7x:2x2x1
jax: 0.10.0
libtpu: 0.0.40
codegen_flags: <defaults>
</compile_context>

<pallas_src>
import math
import functools

import jax
import jax.numpy as jnp
from jax.experimental import pallas as pl
from jax.experimental.pallas import tpu as pltpu


# ----------------------------------------------------------------------------
# Kernel bodies
# ----------------------------------------------------------------------------
def _sinpos_grouped_kernel(pos_ref, sel_ref, invf_ref, phase_ref, o_ref, *,
                           groups: int, padding_idx: float):
    """Lane-dense path: `groups` consecutive tokens per output row.

    pos_ref:   [groups, rows_tile] f32   positions, lane-major (dense DMA)
    sel_ref:   [groups, W]         f32   0/1 lane-group selectors
    invf_ref:  [1, W]              f32   duplicated inverse frequencies
    phase_ref: [1, W]              f32   0 for sin half, pi/2 for cos half
    o_ref:     [rows_tile, W]            W = groups * embedding_dim (mult of 128)
    """
    # lane-major -> sublane-major: tiny XLU transpose (groups <= 8 rows).
    pos_rows = jnp.transpose(pos_ref[...])                 # [rows_tile, groups]
    sel = sel_ref[...]                                     # [groups, W]

    # Expand each of the `groups` per-row positions across its D-lane group
    # with an unrolled multiply-accumulate against 0/1 selectors (pure VPU).
    pos_exp = pos_rows[:, 0:1] * sel[0:1, :]
    for i in range(1, groups):
        pos_exp = pos_exp + pos_rows[:, i:i + 1] * sel[i:i + 1, :]

    # One full-width sin: sin(x) on the first half of each token's lanes,
    # sin(x + pi/2) == cos(x) on the second half.
    ang = pos_exp * invf_ref[...] + phase_ref[...]
    valid = pos_exp > padding_idx                          # pads sit at padding_idx
    o_ref[...] = jnp.where(valid, jnp.sin(ang), 0.0).astype(o_ref.dtype)


def _sinpos_bsd_kernel(pos_ref, invf_ref, phase_ref, o_ref, *,
                       padding_idx: float):
    """Fallback (B, S, D)-blocked path (already lane-dense when D % 128 == 0).

    pos_ref:   [b_tile, s_tile]     f32
    invf_ref:  [1, D]               f32
    phase_ref: [1, D]               f32
    o_ref:     [b_tile, s_tile, D]
    """
    pos = pos_ref[...]                                     # [b_tile, s_tile]
    ang = (pos[:, :, None] * invf_ref[...][None, :, :]
           + phase_ref[...][None, :, :])                   # [b_tile, s_tile, D]
    valid = (pos > padding_idx)[:, :, None]
    o_ref[...] = jnp.where(valid, jnp.sin(ang), 0.0).astype(o_ref.dtype)


# ----------------------------------------------------------------------------
# Tiling helpers
# ----------------------------------------------------------------------------
def _vmem_limit_bytes() -> int:
    try:
        cap = int(pltpu.get_tpu_info().vmem_capacity_bytes)
    except Exception:
        cap = 64 * 1024 * 1024          # conservative: v7x physical VMEM
    return min(cap * 3 // 4, 96 * 1024 * 1024)


def _round_down8(x: int) -> int:
    return max(8, (x // 8) * 8)


def _pick_rows_tile(n_rows: int, row_bytes: int, vmem_limit: int) -> int:
    """Rows per block for the grouped-flat path (~8 MiB output blocks)."""
    budget = max(8 * row_bytes, min(8 << 20, vmem_limit // 4))
    tile = _round_down8(budget // row_bytes)
    if n_rows >= 16:
        # keep >= 2 grid steps so the "parallel" axis can be split across both
        # v7x TensorCores (no-op on single-core chips).
        two_step = ((n_rows + 1) // 2 + 7) // 8 * 8
        tile = min(tile, two_step)
    return n_rows if tile >= n_rows else tile


def _pick_bsd_tiles(B: int, S: int, D: int, out_bytes: int, vmem_limit: int):
    """(b_tile, s_tile) for the fallback path, with a VMEM guard on B*D."""
    budget = max(8 * D * out_bytes, min(8 << 20, vmem_limit // 4))
    tok_budget = max(8, budget // (D * out_bytes))         # tokens per block
    if tok_budget >= 8 * B:
        b_tile = B
        s_tile = min(S, _round_down8(tok_budget // B))
    else:
        # B * D too large for one block: tile the batch as well (VMEM guard).
        s_tile = min(S, 8)
        b_tile = min(B, _round_down8(tok_budget // max(s_tile, 1)))
    # keep >= 2 grid steps when possible (v7x megacore sharding).
    if b_tile == B and s_tile == S:
        if S >= 16:
            s_tile = ((S + 1) // 2 + 7) // 8 * 8
        elif B >= 16:
            b_tile = ((B + 1) // 2 + 7) // 8 * 8
    return b_tile, s_tile


# ----------------------------------------------------------------------------
# Wrapper
# ----------------------------------------------------------------------------
def sinusoidal_positional_embedding(tokens: jax.Array,
                                    embedding_dim: int,
                                    padding_idx: int,
                                    out_dtype=jnp.float32) -> jax.Array:
    """tokens: [B, S] int32 -> [B, S, embedding_dim] out_dtype."""
    assert embedding_dim % 2 == 0 and embedding_dim >= 4, (
        "kernel supports even embedding_dim >= 4 "
        "(odd dims would need the PyTorch zero-pad column)")
    half = embedding_dim // 2
    B, S = tokens.shape
    D = embedding_dim

    # fairseq make_positions(): cheap [B, S] ops in the wrapper -> no
    # cross-tile dependency inside the kernel.
    mask = (tokens != padding_idx).astype(jnp.int32)
    positions = jnp.cumsum(mask, axis=1) * mask + padding_idx
    pos_f = positions.astype(jnp.float32)                  # exact: positions < 2^24

    # duplicated inverse frequencies + phase: one full-width sin covers both
    # halves (sin(x + pi/2) == cos(x)).
    log_scale = math.log(10000.0) / (half - 1)
    inv_freq = jnp.exp(jnp.arange(half, dtype=jnp.float32)
                       * jnp.float32(-log_scale))                        # [half]
    inv_freq_dup = jnp.concatenate([inv_freq, inv_freq])                 # [D]
    phase_dup = jnp.concatenate(
        [jnp.zeros((half,), jnp.float32),
         jnp.full((half,), math.pi / 2, jnp.float32)])                   # [D]

    vmem_limit = _vmem_limit_bytes()
    out_bytes = jnp.dtype(out_dtype).itemsize
    pad_f = float(padding_idx)

    # ---- lane-dense grouped path (D not a multiple of 128) ------------------
    g = 0
    if D % 128 != 0:
        g = math.lcm(D, 128) // D
        if g > 8 or (B * S) % g != 0:
            g = 0                                           # fall back

    if g:
        W = g * D                                           # multiple of 128
        n_rows = (B * S) // g
        # lane-major positions => wide, dense HBM->VMEM lines for the pos stream
        pos_t = pos_f.reshape(n_rows, g).T                  # [g, n_rows]
        sel = (jnp.arange(W, dtype=jnp.int32)[None, :] // D
               == jnp.arange(g, dtype=jnp.int32)[:, None]).astype(jnp.float32)
        inv_full = jnp.tile(inv_freq_dup, g).reshape(1, W)
        phase_full = jnp.tile(phase_dup, g).reshape(1, W)

        rows_tile = _pick_rows_tile(n_rows, W * out_bytes, vmem_limit)
        grid = (pl.cdiv(n_rows, rows_tile),)
        kernel = functools.partial(_sinpos_grouped_kernel,
                                   groups=g, padding_idx=pad_f)
        cost = pl.CostEstimate(
            flops=(2 * g + 6) * B * S * D,
            transcendentals=B * S * D,
            bytes_accessed=B * S * D * out_bytes + B * S * 4 + 3 * W * 4)

        out2 = pl.pallas_call(
            kernel,
            out_shape=jax.ShapeDtypeStruct((n_rows, W), out_dtype),
            grid=grid,
            in_specs=[
                pl.BlockSpec((g, rows_tile), lambda i: (0, i)),   # positions
                pl.BlockSpec((g, W), lambda i: (0, 0)),           # selectors
                pl.BlockSpec((1, W), lambda i: (0, 0)),           # inv freqs
                pl.BlockSpec((1, W), lambda i: (0, 0)),           # phase
            ],
            out_specs=pl.BlockSpec((rows_tile, W), lambda i: (i, 0)),
            compiler_params=pltpu.CompilerParams(
                dimension_semantics=("parallel",),
                vmem_limit_bytes=vmem_limit),
            cost_estimate=cost,
        )(pos_t, sel, inv_full, phase_full)
        # free reshape: (n_rows, g*D) row-major == (B, S, D) row-major
        return out2.reshape(B, S, D)

    # ---- fallback: (B, S, D)-blocked (dense stores when D % 128 == 0) -------
    b_tile, s_tile = _pick_bsd_tiles(B, S, D, out_bytes, vmem_limit)
    grid = (pl.cdiv(B, b_tile), pl.cdiv(S, s_tile))
    kernel = functools.partial(_sinpos_bsd_kernel, padding_idx=pad_f)
    cost = pl.CostEstimate(
        flops=6 * B * S * D,
        transcendentals=B * S * D,
        bytes_accessed=B * S * D * out_bytes + B * S * 4 + 2 * D * 4)

    out = pl.pallas_call(
        kernel,
        out_shape=jax.ShapeDtypeStruct((B, S, D), out_dtype),
        grid=grid,
        in_specs=[
            pl.BlockSpec((b_tile, s_tile), lambda b, s: (b, s)),   # positions
            pl.BlockSpec((1, D), lambda b, s: (0, 0)),             # inv freqs
            pl.BlockSpec((1, D), lambda b, s: (0, 0)),             # phase
        ],
        out_specs=pl.BlockSpec((b_tile, s_tile, D), lambda b, s: (b, s, 0)),
        compiler_params=pltpu.CompilerParams(
            dimension_semantics=("parallel", "parallel"),
            vmem_limit_bytes=vmem_limit),
        cost_estimate=cost,
    )(pos_f, inv_freq_dup.reshape(1, D), phase_dup.reshape(1, D))
    return out


# ---------------- pure-JAX reference (mirrors the PyTorch module) -----------
def _ref_get_embedding(num_embeddings, embedding_dim, padding_idx):
    half = embedding_dim // 2
    emb = math.log(10000.0) / (half - 1)
    emb = jnp.exp(jnp.arange(half, dtype=jnp.float32) * -emb)
    emb = jnp.arange(num_embeddings, dtype=jnp.float32)[:, None] * emb[None, :]
    emb = jnp.concatenate([jnp.sin(emb), jnp.cos(emb)], axis=1)
    if embedding_dim % 2 == 1:
        emb = jnp.concatenate([emb, jnp.zeros((num_embeddings, 1))], axis=1)
    emb = emb.at[padding_idx, :].set(0.0)
    return emb


def _ref_forward(tokens, embedding_dim, padding_idx):
    bsz, seq_len = tokens.shape
    max_pos = padding_idx + 1 + seq_len
    weights = _ref_get_embedding(max_pos, embedding_dim, padding_idx)
    mask = (tokens != padding_idx).astype(jnp.int32)
    positions = jnp.cumsum(mask, axis=1) * mask + padding_idx
    return weights[positions.reshape(-1)].reshape(bsz, seq_len, -1)


if __name__ == "__main__":
    B, S, D = 2, 8, 32
    PADDING_IDX = 1

    key = jax.random.PRNGKey(0)
    tokens = jax.random.randint(key, (B, S), minval=0, maxval=10, dtype=jnp.int32)
    tokens = tokens.at[0, -2:].set(PADDING_IDX)   # force explicit pads in row 0

    # main (lane-dense grouped) path: D = 32
    out = sinusoidal_positional_embedding(tokens, D, PADDING_IDX)
    out = jax.block_until_ready(out)
    ref = _ref_forward(tokens, D, PADDING_IDX)
    assert out.shape == (B, S, D)
    assert jnp.allclose(out, ref, atol=1e-5, rtol=1e-5), \
        "mismatch vs reference (grouped path)"

    # fallback (B, S, D)-blocked path: D = 256 (dense stores, D % 128 == 0)
    D2 = 256
    out2 = sinusoidal_positional_embedding(tokens, D2, PADDING_IDX)
    out2 = jax.block_until_ready(out2)
    ref2 = _ref_forward(tokens, D2, PADDING_IDX)
    assert out2.shape == (B, S, D2)
    assert jnp.allclose(out2, ref2, atol=1e-5, rtol=1e-5), \
        "mismatch vs reference (fallback path)"

    print("KERNEL_OK")
</pallas_src>

<mosaic_0001>
module attributes {stable_mosaic.version = 11 : i64} {
  func.func @_sinpos_grouped_kernel(%arg0: i32, %arg1: memref<4x4xf32, #tpu.memory_space<vmem>>, %arg2: memref<4x128xf32, #tpu.memory_space<vmem>>, %arg3: memref<1x128xf32, #tpu.memory_space<vmem>>, %arg4: memref<1x128xf32, #tpu.memory_space<vmem>>, %arg5: memref<4x128xf32, #tpu.memory_space<vmem>>) attributes {dimension_semantics = [#tpu.dimension_semantics<parallel>], iteration_bounds = array<i64: 1>, scalar_prefetch = 0 : i64, scratch_operands = 0 : i64, tpu.core_type = #tpu.core_type<tc>, window_params = [{transform_indices = @transform_0, window_bounds = array<i64: 4, 4>}, {pipeline_mode = #tpu.pipeline_mode<synchronous>, transform_indices = @transform_1, window_bounds = array<i64: 4, 128>}, {pipeline_mode = #tpu.pipeline_mode<synchronous>, transform_indices = @transform_2, window_bounds = array<i64: 1, 128>}, {pipeline_mode = #tpu.pipeline_mode<synchronous>, transform_indices = @transform_3, window_bounds = array<i64: 1, 128>}, {transform_indices = @transform_4, window_bounds = array<i64: 4, 128>}]} {
    %c0 = arith.constant 0 : index
    %c0_0 = arith.constant 0 : index
    %0 = vector.load %arg1[%c0, %c0_0] : memref<4x4xf32, #tpu.memory_space<vmem>>, vector<4x4xf32>
    %1 = tpu.transpose %0, [1, 0] : vector<4x4xf32> -> vector<4x4xf32>
    %c0_1 = arith.constant 0 : index
    %c0_2 = arith.constant 0 : index
    %2 = vector.load %arg2[%c0_1, %c0_2] : memref<4x128xf32, #tpu.memory_space<vmem>>, vector<4x128xf32>
    %3 = vector.extract_strided_slice %1 {offsets = [0, 0], sizes = [4, 1], strides = [1, 1]} : vector<4x4xf32> to vector<4x1xf32>
    %4 = vector.extract_strided_slice %2 {offsets = [0, 0], sizes = [1, 128], strides = [1, 1]} : vector<4x128xf32> to vector<1x128xf32>
    %5 = vector.broadcast %3 : vector<4x1xf32> to vector<4x128xf32>
    %6 = vector.broadcast %4 : vector<1x128xf32> to vector<4x128xf32>
    %7 = arith.mulf %5, %6 : vector<4x128xf32>
    %8 = vector.extract_strided_slice %1 {offsets = [0, 1], sizes = [4, 1], strides = [1, 1]} : vector<4x4xf32> to vector<4x1xf32>
    %9 = vector.extract_strided_slice %2 {offsets = [1, 0], sizes = [1, 128], strides = [1, 1]} : vector<4x128xf32> to vector<1x128xf32>
    %10 = vector.broadcast %8 : vector<4x1xf32> to vector<4x128xf32>
    %11 = vector.broadcast %9 : vector<1x128xf32> to vector<4x128xf32>
    %12 = arith.mulf %10, %11 : vector<4x128xf32>
    %13 = arith.addf %7, %12 : vector<4x128xf32>
    %14 = vector.extract_strided_slice %1 {offsets = [0, 2], sizes = [4, 1], strides = [1, 1]} : vector<4x4xf32> to vector<4x1xf32>
    %15 = vector.extract_strided_slice %2 {offsets = [2, 0], sizes = [1, 128], strides = [1, 1]} : vector<4x128xf32> to vector<1x128xf32>
    %16 = vector.broadcast %14 : vector<4x1xf32> to vector<4x128xf32>
    %17 = vector.broadcast %15 : vector<1x128xf32> to vector<4x128xf32>
    %18 = arith.mulf %16, %17 : vector<4x128xf32>
    %19 = arith.addf %13, %18 : vector<4x128xf32>
    %20 = vector.extract_strided_slice %1 {offsets = [0, 3], sizes = [4, 1], strides = [1, 1]} : vector<4x4xf32> to vector<4x1xf32>
    %21 = vector.extract_strided_slice %2 {offsets = [3, 0], sizes = [1, 128], strides = [1, 1]} : vector<4x128xf32> to vector<1x128xf32>
    %22 = vector.broadcast %20 : vector<4x1xf32> to vector<4x128xf32>
    %23 = vector.broadcast %21 : vector<1x128xf32> to vector<4x128xf32>
    %24 = arith.mulf %22, %23 : vector<4x128xf32>
    %25 = arith.addf %19, %24 : vector<4x128xf32>
    %c0_3 = arith.constant 0 : index
    %c0_4 = arith.constant 0 : index
    %26 = vector.load %arg3[%c0_3, %c0_4] : memref<1x128xf32, #tpu.memory_space<vmem>>, vector<1x128xf32>
    %27 = vector.broadcast %26 : vector<1x128xf32> to vector<4x128xf32>
    %28 = arith.mulf %25, %27 : vector<4x128xf32>
    %c0_5 = arith.constant 0 : index
    %c0_6 = arith.constant 0 : index
    %29 = vector.load %arg4[%c0_5, %c0_6] : memref<1x128xf32, #tpu.memory_space<vmem>>, vector<1x128xf32>
    %30 = vector.broadcast %29 : vector<1x128xf32> to vector<4x128xf32>
    %31 = arith.addf %28, %30 : vector<4x128xf32>
    %cst = arith.constant 1.000000e+00 : f32
    %32 = vector.broadcast %cst : f32 to vector<4x128xf32>
    %33 = arith.cmpf ogt, %25, %32 : vector<4x128xf32>
    %34 = math.sin %31 : vector<4x128xf32>
    %cst_7 = arith.constant 0.000000e+00 : f32
    %35 = vector.broadcast %cst_7 : f32 to vector<4x128xf32>
    %36 = arith.select %33, %34, %35 : vector<4x128xi1>, vector<4x128xf32>
    %c0_8 = arith.constant 0 : index
    %c0_9 = arith.constant 0 : index
    %37 = vector.load %arg5[%c0_8, %c0_9] : memref<4x128xf32, #tpu.memory_space<vmem>>, vector<4x128xf32>
    tpu.vector_store %arg5[%c0_8, %c0_9], %36 {strides = array<i32>} : memref<4x128xf32, #tpu.memory_space<vmem>>, vector<4x128xf32>,
    return
  }
  func.func @transform_0(%arg0: i32) -> (i32, i32) {
    %c0_i32 = arith.constant 0 : i32
    %c0_i32_0 = arith.constant 0 : i32
    return %c0_i32, %arg0 : i32, i32
  }
  func.func @transform_1(%arg0: i32) -> (i32, i32) {
    %c0_i32 = arith.constant 0 : i32
    %c0_i32_0 = arith.constant 0 : i32
    %c0_i32_1 = arith.constant 0 : i32
    return %c0_i32, %c0_i32_0 : i32, i32
  }
  func.func @transform_2(%arg0: i32) -> (i32, i32) {
    %c0_i32 = arith.constant 0 : i32
    %c0_i32_0 = arith.constant 0 : i32
    %c0_i32_1 = arith.constant 0 : i32
    return %c0_i32, %c0_i32_0 : i32, i32
  }
  func.func @transform_3(%arg0: i32) -> (i32, i32) {
    %c0_i32 = arith.constant 0 : i32
    %c0_i32_0 = arith.constant 0 : i32
    %c0_i32_1 = arith.constant 0 : i32
    return %c0_i32, %c0_i32_0 : i32, i32
  }
  func.func @transform_4(%arg0: i32) -> (i32, i32) {
    %c0_i32 = arith.constant 0 : i32
    %c0_i32_0 = arith.constant 0 : i32
    return %arg0, %c0_i32 : i32, i32
  }
}

</mosaic_0001>

<llo_original>
// kernel: tpu_custom_call.1
$region0: #{tpu_custom_call.1}
  #allocation0 [shape = 'u32[]', space=smem, size = 0x4, offset = 0x4, fixed_abs, tag = 'smem constant byte address 0x4 - core index']
  #allocation1 [shape = 'u32[144,128]{1,0:T(1,128)}', space=vmem, size = 0x12000, scoped, tag = 'internal scratch']
  %s0 = inlined_call_operand.hbm [shape: f32[4,4], index: 0, kind: input, shape index: {}]
  %s1 = inlined_call_operand.hbm [shape: f32[4,128], index: 1, kind: input, shape index: {}]
  %s2 = inlined_call_operand.vmem [shape: f32[1,128], index: 2, kind: input, shape index: {}]
  %s3 = inlined_call_operand.vmem [shape: f32[1,128], index: 3, kind: input, shape index: {}]
  %s4 = inlined_call_operand.hbm [shape: f32[4,128], index: 4, kind: output, shape index: {}]
  %s5 = sld [smem:[#allocation0]]
  $region34: #{tpu_custom_call.1} parent=0
    _
  %s7 = ssub.s32 1, %s5
  %s8 = scalar_select 0, %s7, %s5
  $region1: #{tpu_custom_call.1} parent=0
    #allocation2 [shape = 'u8[2048]{0}', space=vmem, size = 0x800, scoped, tag = 'input window, operand 0, single buffered']
    #allocation3 [shape = 's32[1]{0}', space=sflag, size = 0x4, scoped, tag = 'scoped memory for tpu_custom_call.1']
    #allocation4 [shape = 's32[1]{0}', space=sflag, size = 0x4, scoped, tag = 'scoped memory for tpu_custom_call.1']
    #allocation5 [shape = 'u8[2048]{0}', space=vmem, size = 0x800, scoped, tag = 'input window, operand 1, single buffered']
    #allocation6 [shape = 's32[1]{0}', space=sflag, size = 0x4, scoped, tag = 'scoped memory for tpu_custom_call.1']
    #allocation7 [shape = 'u8[2048]{0}', space=vmem, size = 0x800, scoped, tag = 'output window, operand 0, single buffered']
    %9 = vsyncpa [#allocation3], 0
    %10 = vsyncpa [#allocation6], 0
    %11 = vsyncpa [#allocation4], 0
    // Predicated region
    $region2: #{tpu_custom_call.1} parent=1 // pred_check
      _
    $region3: #{tpu_custom_call.1} parent=1 // pred_check_branch
      %13 = sbr.rel (0) target = $region5
    $region4: #{tpu_custom_call.1} parent=1 // pred_region
      %s15 = ssub.s32 64, 64
      %16 = vsyncadd [#allocation3], %s15
      %s18 = sshll.u32 [#allocation2], 4
      %s19 = int_to_ptr.vmem [resolvable:$true] %s18
      %21 = dma.hbm_to_vmem [thread:$0]  %s0, 64, %s19, [#allocation3]
    $region5: #{tpu_custom_call.1} parent=1 // pred_fallthru
      _
    // Predicated region
    $region6: #{tpu_custom_call.1} parent=1 // pred_check
      _
    $region7: #{tpu_custom_call.1} parent=1 // pred_check_branch
      %23 = sbr.rel (0) target = $region9
    $region8: #{tpu_custom_call.1} parent=1 // pred_region
      %s25 = ssub.s32 64, 64
      %26 = vsyncadd [#allocation6], %s25
      %s28 = sshll.u32 [#allocation5], 4
      %s29 = int_to_ptr.vmem [resolvable:$true] %s28
      %31 = dma.hbm_to_vmem [thread:$0]  %s1, 64, %s29, [#allocation6]
    $region9: #{tpu_custom_call.1} parent=1 // pred_fallthru
      _
    // Predicated region
    $region10: #{tpu_custom_call.1} parent=1 // pred_check
      _
    $region11: #{tpu_custom_call.1} parent=1 // pred_check_branch
      %33 = sbr.rel (0) target = $region13
    $region12: #{tpu_custom_call.1} parent=1 // pred_region
      _
    $region13: #{tpu_custom_call.1} parent=1 // pred_fallthru
      _
    // Predicated region
    $region14: #{tpu_custom_call.1} parent=1 // pred_check
      _
    $region15: #{tpu_custom_call.1} parent=1 // pred_check_branch
      %35 = sbr.rel (0) target = $region17
    $region16: #{tpu_custom_call.1} parent=1 // pred_region
      _
    $region17: #{tpu_custom_call.1} parent=1 // pred_fallthru
      _
    // Predicated region
    $region18: #{tpu_custom_call.1} parent=1 // pred_check
      _
    $region19: #{tpu_custom_call.1} parent=1 // pred_check_branch
      %37 = sbr.rel (0) target = $region21
    $region20: #{tpu_custom_call.1} parent=1 // pred_region
      %38 = dma.done [#allocation3], 64
    $region21: #{tpu_custom_call.1} parent=1 // pred_fallthru
      _
    // Predicated region
    $region22: #{tpu_custom_call.1} parent=1 // pred_check
      _
    $region23: #{tpu_custom_call.1} parent=1 // pred_check_branch
      %40 = sbr.rel (0) target = $region25
    $region24: #{tpu_custom_call.1} parent=1 // pred_region
      %41 = dma.done [#allocation6], 64
    $region25: #{tpu_custom_call.1} parent=1 // pred_fallthru
      _
    %v42 = vld [vmem:[#allocation2] sm:$0xf]
    %43 = vxpose.xlu0.b32.start [1/16] %v42, 128
    %44 = vxpose.xlu0.b32.cont [2/16] 0.0, 128
    %45 = vxpose.xlu0.b32.cont [3/16] 0.0, 128
    %46 = vxpose.xlu0.b32.cont [4/16] 0.0, 128
    %47 = vxpose.xlu0.b32.cont [5/16] 0.0, 128
    %48 = vxpose.xlu0.b32.cont [6/16] 0.0, 128
    %49 = vxpose.xlu0.b32.cont [7/16] 0.0, 128
    %50 = vxpose.xlu0.b32.cont [8/16] 0.0, 128
    %51 = vxpose.xlu0.b32.cont [9/16] 0.0, 128
    %52 = vxpose.xlu0.b32.cont [10/16] 0.0, 128
    %53 = vxpose.xlu0.b32.cont [11/16] 0.0, 128
    %54 = vxpose.xlu0.b32.cont [12/16] 0.0, 128
    %55 = vxpose.xlu0.b32.cont [13/16] 0.0, 128
    %56 = vxpose.xlu0.b32.cont [14/16] 0.0, 128
    %57 = vxpose.xlu0.b32.cont [15/16] 0.0, 128
    %58 = vxpose.xlu0.b32.end [16/16] 0.0, 128
    %v59 = vpop.trf.xlu0
    %v60 = vpop.trf.xlu0
    %v61 = vpop.trf.xlu0
    %v62 = vpop.trf.xlu0
    %v63 = vpop.trf.xlu0
    %v64 = vpop.trf.xlu0
    %v65 = vpop.trf.xlu0
    %v66 = vpop.trf.xlu0
    %v67 = vpop.trf.xlu0
    %v68 = vpop.trf.xlu0
    %v69 = vpop.trf.xlu0
    %v70 = vpop.trf.xlu0
    %v71 = vpop.trf.xlu0
    %v72 = vpop.trf.xlu0
    %v73 = vpop.trf.xlu0
    %v74 = vpop.trf.xlu0
    %v75 = vld [vmem:[#allocation5] sm:$0xf]
    %77 = vset.pattern.permute.xlu0 0
    %78 = vperm.xlu0 %77, %v59
    %v79 = vpop.permute.xlu0 %78
    %v81 = vlaneseq
    %v82 = vshrl.u32 %v81, 7
    %v83 = vsub.s32 0, %v82
    %v84 = vrot.slane %v75, %v83
    %v85 = vmul.f32 %v79, %v84
    %86 = vset.pattern.permute.xlu0 1
    %87 = vperm.xlu0 %86, %v59
    %v88 = vpop.permute.xlu0 %87
    %v90 = vlaneseq
    %v91 = vshrl.u32 %v90, 7
    %v92 = vsub.s32 1, %v91
    %v93 = vrot.slane %v75, %v92
    %v94 = vmul.f32 %v88, %v93
    %v95 = vadd.f32 %v85, %v94
    %96 = vset.pattern.permute.xlu0 2
    %97 = vperm.xlu0 %96, %v59
    %v98 = vpop.permute.xlu0 %97
    %v100 = vlaneseq
    %v101 = vshrl.u32 %v100, 7
    %v102 = vsub.s32 2, %v101
    %v103 = vrot.slane %v75, %v102
    %v104 = vmul.f32 %v98, %v103
    %v105 = vadd.f32 %v95, %v104
    %106 = vset.pattern.permute.xlu0 3
    %107 = vperm.xlu0 %106, %v59
    %v108 = vpop.permute.xlu0 %107
    %v110 = vlaneseq
    %v111 = vshrl.u32 %v110, 7
    %v112 = vsub.s32 3, %v111
    %v113 = vrot.slane %v75, %v112
    %v114 = vmul.f32 %v108, %v113
    %v115 = vadd.f32 %v105, %v114
    %v116 = vld [vmem:[%s2] sm:$0x1]
    %v118 = vlaneseq
    %v119 = vshrl.u32 %v118, 7
    %v120 = vsub.s32 0, %v119
    %v121 = vrot.slane %v116, %v120
    %v123 = vmul.f32 %v115, %v121
    %v124 = vld [vmem:[%s3] sm:$0x1]
    %v126 = vlaneseq
    %v127 = vshrl.u32 %v126, 7
    %v128 = vsub.s32 0, %v127
    %v129 = vrot.slane %v124, %v128
    %v131 = vadd.f32 %v123, %v129
    %vm132 = vcmp.gt.f32.partialorder %v115, 1.0
    %v133 = vand.u32 2147483647, %v131
    %vm134 = vcmp.le.f32.partialorder %v133, 0.7853982
    %vm135 = vcmp.lt.s32.totalorder %v131, 0
    %v136 = vand.u32 %v131, 2139095040
    %v137 = vshrl.u32 %v136, 23
    %v138 = vsub.s32 %v137, 127
    %v139 = vand.u32 2147483647, %v131
    %v140 = vand.u32 %v139, 8388607
    %v141 = vor.u32 %v140, 8388608
    %v142 = vsub.s32 0, %v141
    %v143 = vadd.s32 %v138, 1
    %vm144 = vcmp.gt.s32.totalorder %v143, 0
    %v145 = vsel %vm144, %v143, 0
    %v146 = vshrl.u32 %v145, 5
    %v147 = vand.u32 %v145, 31
    %v148 = vsub.s32 32, %v147
    %v149 = vshrl.u32 683565275, %v148
    %v150 = vshll.u32 683565275, %v147
    %v151 = vshrl.u32 2475754826, %v148
    %v152 = vor.u32 %v150, %v151
    %v153 = vshll.u32 2475754826, %v147
    %v154 = vshrl.u32 2131351028, %v148
    %v155 = vor.u32 %v153, %v154
    %v156 = vshll.u32 2131351028, %v147
    %v157 = vshrl.u32 2102212464, %v148
    %v158 = vor.u32 %v156, %v157
    %v159 = vshll.u32 2102212464, %v147
    %v160 = vshrl.u32 920167782, %v148
    %v161 = vor.u32 %v159, %v160
    %v162 = vshll.u32 920167782, %v147
    %v163 = vshrl.u32 1326507024, %v148
    %v164 = vor.u32 %v162, %v163
    %vm165 = vcmp.lt.s32.totalorder %v146, 1
    %vm166 = vcmp.lt.s32.totalorder %v146, 2
    %vm167 = vcmp.lt.s32.totalorder %v146, 3
    %vm168 = vcmp.lt.s32.totalorder %v146, 4
    %v169 = vsel %vm165, %v149, %v152
    %v170 = vsel %vm168, %v158, 2102212464
    %v171 = vsel %vm167, %v155, %v170
    %v172 = vsel %vm166, %v169, %v171
    %v173 = vsel %vm165, %v152, %v155
    %v174 = vsel %vm168, %v161, 920167782
    %v175 = vsel %vm167, %v158, %v174
    %v176 = vsel %vm166, %v173, %v175
    %v177 = vsel %vm165, %v155, %v158
    %v178 = vsel %vm168, %v164, 1326507024
    %v179 = vsel %vm167, %v161, %v178
    %v180 = vsel %vm166, %v177, %v179
    %v181 = vshll.u32 %v141, 8
    %v182 = vmul.u32.u64.compose %v181, %v180
    %v183 = vextract.low.u32 %v182
    %v184 = vextract.high.u32 %v182
    %v185 = vmul.u32.u64.compose %v181, %v176
    %v186 = vextract.low.u32 %v185
    %v187 = vextract.high.u32 %v185
    %v188 = vmul.u32 %v181, %v172
    %v189 = vadd.s32 %v184, %v186
    %vm190 = vc.u32 %v184, %v186
    %v191 = vadd.s32 %v187, 1
    %v192 = vsel %vm190, %v191, %v187
    %v193 = vadd.s32 %v188, %v192
    %v194 = vadd.s32 %v193, 536870912
    %v195 = vshrl.u32 %v194, 30
    %v196 = vshll.u32 %v195, 30
    %v197 = vsub.s32 %v193, %v196
    %vm198 = vcmp.lt.s32.totalorder %v197, 0
    %v199 = vsub.s32 0, %v197
    %v200 = vsel %vm198, %v199, %v197
    %v201 = vclz %v200
    %v202 = vsub.s32 %v201, 2
    %vm203 = vcmp.gt.s32.totalorder 0, %v202
    %v204 = vsel %vm203, 0, %v202
    %v205 = vsub.s32 32, %v204
    %v206 = vshll.u32 %v197, %v204
    %v207 = vshrl.u32 %v189, %v205
    %v208 = vor.u32 %v206, %v207
    %v209 = vsub.s32 4294967266, %v204
    %v210 = vadd.s32 %v209, 127
    %v211 = vshll.u32 %v210, 23
    %v212 = vor.u32 4788187, %v211
    %v213 = vand.u32 2147483647, %v212
    %v215 = vcvt.s32.f32 %v208
    %v216 = vmul.f32 %v215, %v213
    %v217 = vxor.u32 %v216, 2147483648
    %v218 = vsel %vm135, %v217, %v216
    %v219 = vsub.s32 4, %v195
    %v220 = vsel %vm135, %v219, %v195
    %v221 = vsel %vm134, %v131, %v218
    %v222 = vsel %vm134, 0, %v220
    %v223 = vcosq.f32.pop %v221
    %v224 = vsinq.f32.pop %v221
    %vm225 = vweird.f32 %v131
    %v226 = vadd.s32 %v222, 3
    %v227 = vand.u32 %v226, 3
    %vm228 = vcmp.lt.s32.totalorder %v227, 2
    %vm229 = vcmp.eq.s32.totalorder %v227, 0
    %v230 = vxor.u32 %v224, 2147483648
    %v231 = vsel %vm229, %v223, %v230
    %vm232 = vcmp.eq.s32.totalorder %v227, 2
    %v233 = vxor.u32 %v223, 2147483648
    %v234 = vsel %vm232, %v233, %v224
    %v235 = vsel %vm228, %v231, %v234
    %v236 = vsel %vm225, nan, %v235
    %v237 = vsel %vm132, %v236, 0.0
    %238 = vst [vmem:[#allocation7] sm:$0xf] %v237
    // Predicated region
    $region26: #{tpu_custom_call.1} parent=1 // pred_check
      _
    $region27: #{tpu_custom_call.1} parent=1 // pred_check_branch
      %240 = sbr.rel (0) target = $region29
    $region28: #{tpu_custom_call.1} parent=1 // pred_region
      %s242 = ssub.s32 64, 64
      %243 = vsyncadd [#allocation4], %s242
      %s245 = sshll.u32 [#allocation7], 4
      %s246 = int_to_ptr.vmem [resolvable:$true] %s245
      %248 = dma.vmem_to_hbm [thread:$0]  %s246, 64, %s4, [#allocation4]
    $region29: #{tpu_custom_call.1} parent=1 // pred_fallthru
      _
    // Predicated region
    $region30: #{tpu_custom_call.1} parent=1 // pred_check
      _
    $region31: #{tpu_custom_call.1} parent=1 // pred_check_branch
      %250 = sbr.rel (0) target = $region33
    $region32: #{tpu_custom_call.1} parent=1 // pred_region
      %251 = dma.done [#allocation4], 64
    $region33: #{tpu_custom_call.1} parent=1 // pred_fallthru
      _
    %252 = vsyncpa [#allocation3], 1
    %253 = vsyncpa [#allocation6], 1
    %254 = vsyncpa [#allocation4], 1

</llo_original>
